<compile_context>
chip_gen: v7x
topology: tpu7x:2x2x1
jax: 0.10.0
libtpu: 0.0.40
codegen_flags: <defaults>
</compile_context>

<pallas_src>
import jax
import jax.numpy as jnp
from jax.experimental import pallas as pl
from jax.experimental.pallas import tpu as pltpu


def _cdiv(a: int, b: int) -> int:
    return -(-a // b)


def _bilinear_matrix(out_size: int, in_size: int) -> jnp.ndarray:
    """Row-stochastic (out_size, in_size) 1-D linear-interp matrix.

    Matches torch.nn.functional.interpolate(..., mode='bilinear',
    align_corners=False) per-axis source-index formula:
        src = (dst + 0.5) * (in/out) - 0.5, clamped below at 0.
    """
    scale = in_size / out_size
    dst = jnp.arange(out_size, dtype=jnp.float32)
    src = jnp.maximum((dst + 0.5) * scale - 0.5, 0.0)
    i0 = jnp.clip(jnp.floor(src).astype(jnp.int32), 0, in_size - 1)
    i1 = jnp.minimum(i0 + 1, in_size - 1)
    lam = src - i0.astype(jnp.float32)
    rows = jnp.arange(out_size)
    w = jnp.zeros((out_size, in_size), jnp.float32)
    w = w.at[rows, i0].add(1.0 - lam)
    w = w.at[rows, i1].add(lam)
    return w


def _interp_kernel(x_ref, wh_ref, ww_ref, o_ref):
    # x_ref : (1, Bnc*H_in, W_in)    current channel batch, native dtype
    # wh_ref: (H_out, H_in)          VMEM-resident H-pass weights
    # ww_ref: (W_in, W_out)          VMEM-resident W-pass weights
    # o_ref : (1, H_out, Bnc*W_out)  lane-dense output slab
    h_out, h_in = wh_ref.shape
    w_in, w_out = ww_ref.shape
    bnc = x_ref.shape[1] // h_in

    x = x_ref[0]                                                      # (Bnc*H_in, W_in)

    # W-pass: one flattened MXU matmul with M = Bnc*H_in rows.
    t = jnp.dot(x, ww_ref[...], preferred_element_type=jnp.float32)   # (Bnc*H_in, W_out) f32
    t = t.astype(wh_ref.dtype)

    # Regroup channels into the lane dim: (Bnc*H_in, W_out) -> (H_in, Bnc*W_out)
    # via static slices + lane-dim concatenate.
    merged = jnp.concatenate(
        [t[b * h_in:(b + 1) * h_in, :] for b in range(bnc)], axis=1)   # (H_in, Bnc*W_out)

    # H-pass: one MXU matmul whose output is lane-dense (N = Bnc*W_out).
    y = jnp.dot(wh_ref[...], merged, preferred_element_type=jnp.float32)  # (H_out, Bnc*W_out)
    o_ref[0] = y.astype(o_ref.dtype)


def _choose_channel_batch(nc, h_in, w_in, h_out, w_out, itemsize):
    """Pick how many channels to process per grid step."""
    lane_min = _cdiv(128, w_out)                 # lane-dense output stores
    target = max(8, lane_min, _cdiv(512, w_out))
    # Per-channel VMEM: double-buffered in/out blocks + f32 intermediates.
    per_chan = (2 * itemsize * (h_in * w_in + h_out * w_out)
                + 16 * (h_in * w_out + h_out * w_out))
    cap = max(1, (24 * 1024 * 1024) // per_chan)  # conservative vs v7x's 64 MiB VMEM
    bnc = int(min(nc, target, cap))
    # Keep >= 2 grid steps for v7x megacore when both halves stay lane-dense.
    if bnc == nc and nc > 1 and nc >= 2 * lane_min:
        bnc = _cdiv(nc, 2)
    return max(1, bnc)
    # TODO(synk): for 4K-class resizes (single-channel blocks exceeding VMEM)
    # add grid axes tiling H_out/W_out; for very large in_size the dense Wh/Ww
    # (2 nonzeros/row) waste MXU FLOPs — a gather+lerp VPU formulation would
    # keep the kernel bandwidth-bound.


def interpolate_bilinear(x: jnp.ndarray, size, mode: str = "bilinear") -> jnp.ndarray:
    """Pallas equivalent of Interpolate(size, mode)(x) for NCHW inputs."""
    if mode != "bilinear":
        # TODO(synk): only 'bilinear' (align_corners=False, no antialias) is
        # implemented; bicubic/trilinear need different weights / 3-D tiling.
        raise NotImplementedError(f"mode={mode!r} not implemented")
    if isinstance(size, int):
        size = (size, size)

    n, c, h_in, w_in = x.shape
    h_out, w_out = size
    nc = n * c

    # bf16 inputs stay bf16 on the MXU (f32 accumulation); otherwise f32.
    compute_dtype = jnp.bfloat16 if x.dtype == jnp.bfloat16 else jnp.float32
    wh = _bilinear_matrix(h_out, h_in).astype(compute_dtype)       # (H_out, H_in)
    ww = _bilinear_matrix(w_out, w_in).T.astype(compute_dtype)     # (W_in, W_out)

    itemsize = jnp.dtype(x.dtype).itemsize
    bnc = _choose_channel_batch(nc, h_in, w_in, h_out, w_out, itemsize)
    g = _cdiv(nc, bnc)
    nc_pad = g * bnc

    x_flat = x.reshape(nc, h_in, w_in)
    if nc_pad != nc:
        x_flat = jnp.pad(x_flat, ((0, nc_pad - nc), (0, 0), (0, 0)))
    x_flat = x_flat.reshape(g, bnc * h_in, w_in)

    flops = 2 * nc_pad * h_in * w_out * (w_in + h_out)
    bytes_accessed = (nc_pad * h_in * w_in * itemsize
                      + nc_pad * h_out * w_out * itemsize
                      + (wh.size + ww.size) * jnp.dtype(compute_dtype).itemsize)
    cost = pl.CostEstimate(flops=int(flops), transcendentals=0,
                           bytes_accessed=int(bytes_accessed))

    out = pl.pallas_call(
        _interp_kernel,
        out_shape=jax.ShapeDtypeStruct((g, h_out, bnc * w_out), x.dtype),
        grid_spec=pltpu.PrefetchScalarGridSpec(
            num_scalar_prefetch=0,
            grid=(g,),
            in_specs=[
                pl.BlockSpec((1, bnc * h_in, w_in), lambda i: (i, 0, 0)),
                # Whole-array VMEM residents: no per-step double-buffering/DMA.
                pl.BlockSpec(memory_space=pltpu.MemorySpace.VMEM),
                pl.BlockSpec(memory_space=pltpu.MemorySpace.VMEM),
            ],
            out_specs=pl.BlockSpec((1, h_out, bnc * w_out), lambda i: (i, 0, 0)),
        ),
        compiler_params=pltpu.CompilerParams(
            dimension_semantics=("parallel",),
            vmem_limit_bytes=48 * 1024 * 1024,
        ),
        cost_estimate=cost,
    )(x_flat, wh, ww)

    # Un-fold the lane-packed output back to NCHW (free layout plumbing).
    out = out.reshape(g, h_out, bnc, w_out).transpose(0, 2, 1, 3)
    out = out.reshape(nc_pad, h_out, w_out)[:nc]
    return out.reshape(n, c, h_out, w_out)


if __name__ == "__main__":
    key = jax.random.PRNGKey(0)
    # Small NCHW input: upsample 8x8 -> 16x16, i.e. Interpolate((16,16), 'bilinear').
    x = jax.random.normal(key, (2, 4, 8, 8), dtype=jnp.float32)
    size = (16, 16)

    y = interpolate_bilinear(x, size, mode="bilinear")
    y = jax.block_until_ready(y)

    # Reference: plain-JAX separable bilinear with the same align_corners=False formula.
    wh = _bilinear_matrix(size[0], x.shape[2])
    ww = _bilinear_matrix(size[1], x.shape[3])
    y_ref = jnp.einsum("oh,nchw,pw->ncop", wh, x, ww)
    assert y.shape == (2, 4, 16, 16)
    assert jnp.allclose(y, y_ref, atol=1e-5, rtol=1e-5)

    print("KERNEL_OK")
</pallas_src>

<mosaic_0001>
module attributes {stable_mosaic.version = 11 : i64} {
  func.func @_interp_kernel(%arg0: i32, %arg1: memref<1x64x8xf32, #tpu.memory_space<vmem>>, %arg2: memref<16x8xf32, #tpu.memory_space<vmem>>, %arg3: memref<8x16xf32, #tpu.memory_space<vmem>>, %arg4: memref<1x16x128xf32, #tpu.memory_space<vmem>>) attributes {dimension_semantics = [#tpu.dimension_semantics<parallel>], iteration_bounds = array<i64: 1>, scalar_prefetch = 0 : i64, scratch_operands = 0 : i64, tpu.core_type = #tpu.core_type<tc>, window_params = [{transform_indices = @transform_0, window_bounds = array<i64: 1, 64, 8>}, {pipeline_mode = #tpu.pipeline_mode<synchronous>, transform_indices = @transform_1, window_bounds = array<i64: 16, 8>}, {pipeline_mode = #tpu.pipeline_mode<synchronous>, transform_indices = @transform_2, window_bounds = array<i64: 8, 16>}, {transform_indices = @transform_3, window_bounds = array<i64: 1, 16, 128>}]} {
    %c0 = arith.constant 0 : index
    %c0_0 = arith.constant 0 : index
    %c0_1 = arith.constant 0 : index
    %0 = vector.load %arg1[%c0, %c0_0, %c0_1] : memref<1x64x8xf32, #tpu.memory_space<vmem>>, vector<1x64x8xf32>
    %1 = vector.shape_cast %0 : vector<1x64x8xf32> to vector<64x8xf32>
    %c0_2 = arith.constant 0 : index
    %c0_3 = arith.constant 0 : index
    %2 = vector.load %arg3[%c0_2, %c0_3] : memref<8x16xf32, #tpu.memory_space<vmem>>, vector<8x16xf32>
    %cst = arith.constant dense<0.000000e+00> : vector<64x16xf32>
    %3 = tpu.matmul %1, %2, %cst {dimension_numbers = #tpu.dot_dimension_numbers<[1], [0], [0], [1], [0, 0, 1, 1], [], []>} : vector<64x8xf32>, vector<8x16xf32>, vector<64x16xf32> -> vector<64x16xf32>
    %4 = vector.extract_strided_slice %3 {offsets = [0, 0], sizes = [8, 16], strides = [1, 1]} : vector<64x16xf32> to vector<8x16xf32>
    %5 = vector.extract_strided_slice %3 {offsets = [8, 0], sizes = [8, 16], strides = [1, 1]} : vector<64x16xf32> to vector<8x16xf32>
    %6 = vector.extract_strided_slice %3 {offsets = [16, 0], sizes = [8, 16], strides = [1, 1]} : vector<64x16xf32> to vector<8x16xf32>
    %7 = vector.extract_strided_slice %3 {offsets = [24, 0], sizes = [8, 16], strides = [1, 1]} : vector<64x16xf32> to vector<8x16xf32>
    %8 = vector.extract_strided_slice %3 {offsets = [32, 0], sizes = [8, 16], strides = [1, 1]} : vector<64x16xf32> to vector<8x16xf32>
    %9 = vector.extract_strided_slice %3 {offsets = [40, 0], sizes = [8, 16], strides = [1, 1]} : vector<64x16xf32> to vector<8x16xf32>
    %10 = vector.extract_strided_slice %3 {offsets = [48, 0], sizes = [8, 16], strides = [1, 1]} : vector<64x16xf32> to vector<8x16xf32>
    %11 = vector.extract_strided_slice %3 {offsets = [56, 0], sizes = [8, 16], strides = [1, 1]} : vector<64x16xf32> to vector<8x16xf32>
    %12 = tpu.concatenate %4, %5, %6, %7, %8, %9, %10, %11 in 1 : vector<8x16xf32>, vector<8x16xf32>, vector<8x16xf32>, vector<8x16xf32>, vector<8x16xf32>, vector<8x16xf32>, vector<8x16xf32>, vector<8x16xf32> -> vector<8x128xf32>
    %c0_4 = arith.constant 0 : index
    %c0_5 = arith.constant 0 : index
    %13 = vector.load %arg2[%c0_4, %c0_5] : memref<16x8xf32, #tpu.memory_space<vmem>>, vector<16x8xf32>
    %cst_6 = arith.constant dense<0.000000e+00> : vector<16x128xf32>
    %14 = tpu.matmul %13, %12, %cst_6 {dimension_numbers = #tpu.dot_dimension_numbers<[1], [0], [0], [1], [0, 0, 1, 1], [], []>} : vector<16x8xf32>, vector<8x128xf32>, vector<16x128xf32> -> vector<16x128xf32>
    %c0_7 = arith.constant 0 : index
    %c0_8 = arith.constant 0 : index
    %c0_9 = arith.constant 0 : index
    %15 = vector.load %arg4[%c0_7, %c0_8, %c0_9] : memref<1x16x128xf32, #tpu.memory_space<vmem>>, vector<1x16x128xf32>
    %16 = vector.shape_cast %15 : vector<1x16x128xf32> to vector<16x128xf32>
    %17 = vector.shape_cast %14 : vector<16x128xf32> to vector<1x16x128xf32>
    tpu.vector_store %arg4[%c0_7, %c0_8, %c0_9], %17 {strides = array<i32>} : memref<1x16x128xf32, #tpu.memory_space<vmem>>, vector<1x16x128xf32>,
    return
  }
  func.func @transform_0(%arg0: i32) -> (i32, i32, i32) {
    %c0_i32 = arith.constant 0 : i32
    %c0_i32_0 = arith.constant 0 : i32
    %c0_i32_1 = arith.constant 0 : i32
    return %arg0, %c0_i32, %c0_i32_0 : i32, i32, i32
  }
  func.func @transform_1(%arg0: i32) -> (i32, i32) {
    %c0_i32 = arith.constant 0 : i32
    %c0_i32_0 = arith.constant 0 : i32
    %c0_i32_1 = arith.constant 0 : i32
    return %c0_i32, %c0_i32_0 : i32, i32
  }
  func.func @transform_2(%arg0: i32) -> (i32, i32) {
    %c0_i32 = arith.constant 0 : i32
    %c0_i32_0 = arith.constant 0 : i32
    %c0_i32_1 = arith.constant 0 : i32
    return %c0_i32, %c0_i32_0 : i32, i32
  }
  func.func @transform_3(%arg0: i32) -> (i32, i32, i32) {
    %c0_i32 = arith.constant 0 : i32
    %c0_i32_0 = arith.constant 0 : i32
    %c0_i32_1 = arith.constant 0 : i32
    return %arg0, %c0_i32, %c0_i32_0 : i32, i32, i32
  }
}

</mosaic_0001>

<llo_original>
// kernel: tpu_custom_call.1
$region0: #{tpu_custom_call.1}
  #allocation0 [shape = 'u32[]', space=smem, size = 0x4, offset = 0x4, fixed_abs, tag = 'smem constant byte address 0x4 - core index']
  #allocation1 [shape = 'u32[144,128]{1,0:T(1,128)}', space=vmem, size = 0x12000, scoped, tag = 'internal scratch']
  %s0 = inlined_call_operand.vmem [shape: f32[1,64,8], index: 0, kind: input, shape index: {}]
  %s1 = inlined_call_operand.vmem [shape: f32[16,8], index: 1, kind: input, shape index: {}]
  %s2 = inlined_call_operand.vmem [shape: f32[8,16], index: 2, kind: input, shape index: {}]
  %s3 = inlined_call_operand.hbm [shape: f32[1,16,128], index: 3, kind: output, shape index: {}]
  %s4 = sld [smem:[#allocation0]]
  $region22: #{tpu_custom_call.1} parent=0
    _
  %s6 = ssub.s32 1, %s4
  %s7 = scalar_select 0, %s6, %s4
  $region1: #{tpu_custom_call.1} parent=0
    #allocation2 [shape = 'u8[8192]{0}', space=vmem, size = 0x2000, scoped, tag = 'output window, operand 0, single buffered']
    #allocation3 [shape = 's32[1]{0}', space=sflag, size = 0x4, scoped, tag = 'scoped memory for tpu_custom_call.1']
    %8 = vsyncpa [#allocation3], 0
    // Predicated region
    $region2: #{tpu_custom_call.1} parent=1 // pred_check
      _
    $region3: #{tpu_custom_call.1} parent=1 // pred_check_branch
      %10 = sbr.rel (0) target = $region5
    $region4: #{tpu_custom_call.1} parent=1 // pred_region
      _
    $region5: #{tpu_custom_call.1} parent=1 // pred_fallthru
      _
    // Predicated region
    $region6: #{tpu_custom_call.1} parent=1 // pred_check
      _
    $region7: #{tpu_custom_call.1} parent=1 // pred_check_branch
      %12 = sbr.rel (0) target = $region9
    $region8: #{tpu_custom_call.1} parent=1 // pred_region
      _
    $region9: #{tpu_custom_call.1} parent=1 // pred_fallthru
      _
    // Predicated region
    $region10: #{tpu_custom_call.1} parent=1 // pred_check
      _
    $region11: #{tpu_custom_call.1} parent=1 // pred_check_branch
      %14 = sbr.rel (0) target = $region13
    $region12: #{tpu_custom_call.1} parent=1 // pred_region
      _
    $region13: #{tpu_custom_call.1} parent=1 // pred_fallthru
      _
    %v15 = vld [vmem:[%s0] sm:$0xff]
    %v16 = vld [vmem:[%s0 + $0x8] sm:$0xff]
    %v17 = vld [vmem:[%s0 + $0x10] sm:$0xff]
    %v18 = vld [vmem:[%s0 + $0x18] sm:$0xff]
    %v19 = vld [vmem:[%s0 + $0x20] sm:$0xff]
    %v20 = vld [vmem:[%s0 + $0x28] sm:$0xff]
    %v21 = vld [vmem:[%s0 + $0x30] sm:$0xff]
    %v22 = vld [vmem:[%s0 + $0x38] sm:$0xff]
    %v23 = vld [vmem:[%s2] sm:$0xff]
    %vm24 = vcmask 64512
    %v26 = vsel %vm24, %v15, 0
    %v29 = vsel %vm24, %v16, 0
    %v32 = vsel %vm24, %v17, 0
    %v35 = vsel %vm24, %v18, 0
    %v38 = vsel %vm24, %v19, 0
    %v41 = vsel %vm24, %v20, 0
    %v44 = vsel %vm24, %v21, 0
    %v47 = vsel %vm24, %v22, 0
    %49 = vmatprep.subr.mxu0 0.0
    %50 = vmatpush1.msra.mxu0 %v23
    %51 = vmatprep.subr.mxu0 0.0
    %52 = vmatpush1.msra.mxu0 0.0
    %53 = vmatprep.subr.mxu0 0.0
    %54 = vmatpush1.msra.mxu0 0.0
    %55 = vmatprep.subr.mxu0 0.0
    %56 = vmatpush1.msra.mxu0 0.0
    %57 = vmatprep.subr.mxu0 0.0
    %58 = vmatpush1.msra.mxu0 0.0
    %59 = vmatprep.subr.mxu0 0.0
    %60 = vmatpush1.msra.mxu0 0.0
    %61 = vmatprep.subr.mxu0 0.0
    %62 = vmatpush1.msra.mxu0 0.0
    %63 = vmatprep.subr.mxu0 0.0
    %64 = vmatpush1.msra.mxu0 0.0
    %65 = vmatprep.subr.mxu0 0.0
    %66 = vmatpush1.msra.mxu0 0.0
    %67 = vmatprep.subr.mxu0 0.0
    %68 = vmatpush1.msra.mxu0 0.0
    %69 = vmatprep.subr.mxu0 0.0
    %70 = vmatpush1.msra.mxu0 0.0
    %71 = vmatprep.subr.mxu0 0.0
    %72 = vmatpush1.msra.mxu0 0.0
    %73 = vmatprep.subr.mxu0 0.0
    %74 = vmatpush1.msra.mxu0 0.0
    %75 = vmatprep.subr.mxu0 0.0
    %76 = vmatpush1.msra.mxu0 0.0
    %77 = vmatprep.subr.mxu0 0.0
    %78 = vmatpush1.msra.mxu0 0.0
    %79 = vmatprep.subr.mxu0 0.0
    %80 = vmatpush1.msra.mxu0 0.0
    %81 = vmatprep.subr.mxu0 0.0
    %82 = vmatpush1.msra.mxu0 0.0
    %83 = vmatprep.subr.mxu0 0.0
    %84 = vmatpush1.msra.mxu0 0.0
    %85 = vmatprep.subr.mxu0 0.0
    %86 = vmatpush1.msra.mxu0 0.0
    %87 = vmatprep.subr.mxu0 0.0
    %88 = vmatpush1.msra.mxu0 0.0
    %89 = vmatprep.subr.mxu0 0.0
    %90 = vmatpush1.msra.mxu0 0.0
    %91 = vmatprep.subr.mxu0 0.0
    %92 = vmatpush1.msra.mxu0 0.0
    %93 = vmatprep.subr.mxu0 0.0
    %94 = vmatpush1.msra.mxu0 0.0
    %95 = vmatprep.subr.mxu0 0.0
    %96 = vmatpush1.msra.mxu0 0.0
    %97 = vmatprep.subr.mxu0 0.0
    %98 = vmatpush1.msra.mxu0 0.0
    %99 = vmatprep.subr.mxu0 0.0
    %100 = vmatpush1.msra.mxu0 0.0
    %101 = vmatprep.subr.mxu0 0.0
    %102 = vmatpush1.msra.mxu0 0.0
    %103 = vmatprep.subr.mxu0 0.0
    %104 = vmatpush1.msra.mxu0 0.0
    %105 = vmatprep.subr.mxu0 0.0
    %106 = vmatpush1.msra.mxu0 0.0
    %107 = vmatprep.subr.mxu0 0.0
    %108 = vmatpush1.msra.mxu0 0.0
    %109 = vmatprep.subr.mxu0 0.0
    %110 = vmatpush1.msra.mxu0 0.0
    %111 = vmatprep.subr.mxu0 0.0
    %112 = vmatpush1.msra.mxu0 0.0
    %113 = vmatprep.mubr.f32.mxu0 0.0
    %114 = vmatmul.mubr.f32.gmra.mrb[0].mxu0 %v26
    %v115 = vpop.f32.mrb[0].mxu0
    %v116 = vadd.f32 0.0, %v115
    %v117 = vpop.f32.mrb[0].mxu0
    %118 = vmatprep.mubr.f32.mxu0 0.0
    %119 = vmatmul.mubr.f32.gmra.mrb[0].mxu0 %v29
    %v120 = vpop.f32.mrb[0].mxu0
    %v121 = vadd.f32 0.0, %v120
    %v122 = vpop.f32.mrb[0].mxu0
    %123 = vmatprep.mubr.f32.mxu0 0.0
    %124 = vmatmul.mubr.f32.gmra.mrb[0].mxu0 %v32
    %v125 = vpop.f32.mrb[0].mxu0
    %v126 = vadd.f32 0.0, %v125
    %v127 = vpop.f32.mrb[0].mxu0
    %128 = vmatprep.mubr.f32.mxu0 0.0
    %129 = vmatmul.mubr.f32.gmra.mrb[0].mxu0 %v35
    %v130 = vpop.f32.mrb[0].mxu0
    %v131 = vadd.f32 0.0, %v130
    %v132 = vpop.f32.mrb[0].mxu0
    %133 = vmatprep.mubr.f32.mxu0 0.0
    %134 = vmatmul.mubr.f32.gmra.mrb[0].mxu0 %v38
    %v135 = vpop.f32.mrb[0].mxu0
    %v136 = vadd.f32 0.0, %v135
    %v137 = vpop.f32.mrb[0].mxu0
    %138 = vmatprep.mubr.f32.mxu0 0.0
    %139 = vmatmul.mubr.f32.gmra.mrb[0].mxu0 %v41
    %v140 = vpop.f32.mrb[0].mxu0
    %v141 = vadd.f32 0.0, %v140
    %v142 = vpop.f32.mrb[0].mxu0
    %143 = vmatprep.mubr.f32.mxu0 0.0
    %144 = vmatmul.mubr.f32.gmra.mrb[0].mxu0 %v44
    %v145 = vpop.f32.mrb[0].mxu0
    %v146 = vadd.f32 0.0, %v145
    %v147 = vpop.f32.mrb[0].mxu0
    %148 = vmatprep.mubr.f32.mxu0 0.0
    %149 = vmatmul.mubr.f32.gmra.mrb[0].mxu0 %v47
    %v150 = vpop.f32.mrb[0].mxu0
    %v151 = vadd.f32 0.0, %v150
    %v152 = vpop.f32.mrb[0].mxu0
    %153 = vdwg.mxu0
    %155 = vrot.lane.b32.xlu0 %v121, 16
    %v156 = vpop.permute.xlu0 %155
    %159 = vrot.lane.b32.xlu0 %v126, 32
    %v160 = vpop.permute.xlu0 %159
    %163 = vrot.lane.b32.xlu0 %v131, 48
    %v164 = vpop.permute.xlu0 %163
    %167 = vrot.lane.b32.xlu0 %v136, 64
    %v168 = vpop.permute.xlu0 %167
    %171 = vrot.lane.b32.xlu0 %v141, 80
    %v172 = vpop.permute.xlu0 %171
    %175 = vrot.lane.b32.xlu0 %v146, 96
    %v176 = vpop.permute.xlu0 %175
    %179 = vrot.lane.b32.xlu0 %v151, 112
    %v180 = vpop.permute.xlu0 %179
    %vm182 = vcmask 130048
    %v183 = vsel %vm182, %v116, %v156
    %vm184 = vcmask 261120
    %v185 = vsel %vm184, %v183, %v160
    %vm186 = vcmask 392192
    %v187 = vsel %vm186, %v185, %v164
    %vm188 = vcmask 523264
    %v189 = vsel %vm188, %v187, %v168
    %vm190 = vcmask 654336
    %v191 = vsel %vm190, %v189, %v172
    %vm192 = vcmask 785408
    %v193 = vsel %vm192, %v191, %v176
    %vm194 = vcmask 916480
    %v195 = vsel %vm194, %v193, %v180
    %v196 = vld [vmem:[%s1] sm:$0xff]
    %v197 = vld [vmem:[%s1 + $0x8] sm:$0xff]
    %v199 = vsel %vm24, %v196, 0
    %v202 = vsel %vm24, %v197, 0
    %204 = vmatprep.subr.mxu0 0.0
    %205 = vmatpush1.msra.mxu0 %v195
    %206 = vmatprep.subr.mxu0 0.0
    %207 = vmatpush1.msra.mxu0 0.0
    %208 = vmatprep.subr.mxu0 0.0
    %209 = vmatpush1.msra.mxu0 0.0
    %210 = vmatprep.subr.mxu0 0.0
    %211 = vmatpush1.msra.mxu0 0.0
    %212 = vmatprep.subr.mxu0 0.0
    %213 = vmatpush1.msra.mxu0 0.0
    %214 = vmatprep.subr.mxu0 0.0
    %215 = vmatpush1.msra.mxu0 0.0
    %216 = vmatprep.subr.mxu0 0.0
    %217 = vmatpush1.msra.mxu0 0.0
    %218 = vmatprep.subr.mxu0 0.0
    %219 = vmatpush1.msra.mxu0 0.0
    %220 = vmatprep.subr.mxu0 0.0
    %221 = vmatpush1.msra.mxu0 0.0
    %222 = vmatprep.subr.mxu0 0.0
    %223 = vmatpush1.msra.mxu0 0.0
    %224 = vmatprep.subr.mxu0 0.0
    %225 = vmatpush1.msra.mxu0 0.0
    %226 = vmatprep.subr.mxu0 0.0
    %227 = vmatpush1.msra.mxu0 0.0
    %228 = vmatprep.subr.mxu0 0.0
    %229 = vmatpush1.msra.mxu0 0.0
    %230 = vmatprep.subr.mxu0 0.0
    %231 = vmatpush1.msra.mxu0 0.0
    %232 = vmatprep.subr.mxu0 0.0
    %233 = vmatpush1.msra.mxu0 0.0
    %234 = vmatprep.subr.mxu0 0.0
    %235 = vmatpush1.msra.mxu0 0.0
    %236 = vmatprep.subr.mxu0 0.0
    %237 = vmatpush1.msra.mxu0 0.0
    %238 = vmatprep.subr.mxu0 0.0
    %239 = vmatpush1.msra.mxu0 0.0
    %240 = vmatprep.subr.mxu0 0.0
    %241 = vmatpush1.msra.mxu0 0.0
    %242 = vmatprep.subr.mxu0 0.0
    %243 = vmatpush1.msra.mxu0 0.0
    %244 = vmatprep.subr.mxu0 0.0
    %245 = vmatpush1.msra.mxu0 0.0
    %246 = vmatprep.subr.mxu0 0.0
    %247 = vmatpush1.msra.mxu0 0.0
    %248 = vmatprep.subr.mxu0 0.0
    %249 = vmatpush1.msra.mxu0 0.0
    %250 = vmatprep.subr.mxu0 0.0
    %251 = vmatpush1.msra.mxu0 0.0
    %252 = vmatprep.subr.mxu0 0.0
    %253 = vmatpush1.msra.mxu0 0.0
    %254 = vmatprep.subr.mxu0 0.0
    %255 = vmatpush1.msra.mxu0 0.0
    %256 = vmatprep.subr.mxu0 0.0
    %257 = vmatpush1.msra.mxu0 0.0
    %258 = vmatprep.subr.mxu0 0.0
    %259 = vmatpush1.msra.mxu0 0.0
    %260 = vmatprep.subr.mxu0 0.0
    %261 = vmatpush1.msra.mxu0 0.0
    %262 = vmatprep.subr.mxu0 0.0
    %263 = vmatpush1.msra.mxu0 0.0
    %264 = vmatprep.subr.mxu0 0.0
    %265 = vmatpush1.msra.mxu0 0.0
    %266 = vmatprep.subr.mxu0 0.0
    %267 = vmatpush1.msra.mxu0 0.0
    %268 = vmatprep.mubr.f32.mxu0 0.0
    %269 = vmatmul.mubr.f32.gmra.mrb[0].mxu0 %v199
    %v270 = vpop.f32.mrb[0].mxu0
    %v271 = vadd.f32 0.0, %v270
    %v272 = vpop.f32.mrb[0].mxu0
    %273 = vmatprep.mubr.f32.mxu0 0.0
    %274 = vmatmul.mubr.f32.gmra.mrb[0].mxu0 %v202
    %v275 = vpop.f32.mrb[0].mxu0
    %v276 = vadd.f32 0.0, %v275
    %v277 = vpop.f32.mrb[0].mxu0
    %278 = vdwg.mxu0
    %279 = vst [vmem:[#allocation2] sm:$0xff] %v271
    %280 = vst [vmem:[#allocation2 + $0x8] sm:$0xff] %v276
    // Predicated region
    $region14: #{tpu_custom_call.1} parent=1 // pred_check
      _
    $region15: #{tpu_custom_call.1} parent=1 // pred_check_branch
      %282 = sbr.rel (0) target = $region17
    $region16: #{tpu_custom_call.1} parent=1 // pred_region
      %s284 = ssub.s32 256, 256
      %285 = vsyncadd [#allocation3], %s284
      %s286 = sshll.u32 [#allocation2], 4
      %s287 = int_to_ptr.vmem [resolvable:$true] %s286
      %292 = dma.vmem_to_hbm [thread:$0]  %s287, 256, %s3, [#allocation3], 128, 128, 8
    $region17: #{tpu_custom_call.1} parent=1 // pred_fallthru
      _
    // Predicated region
    $region18: #{tpu_custom_call.1} parent=1 // pred_check
      _
    $region19: #{tpu_custom_call.1} parent=1 // pred_check_branch
      %294 = sbr.rel (0) target = $region21
    $region20: #{tpu_custom_call.1} parent=1 // pred_region
      %295 = dma.done [#allocation3], 256
    $region21: #{tpu_custom_call.1} parent=1 // pred_fallthru
      _
    %296 = vsyncpa [#allocation3], 1

</llo_original>
